<compile_context>
chip_gen: v7x
topology: tpu7x:2x2x1
jax: 0.10.0
libtpu: 0.0.40
codegen_flags: <defaults>
</compile_context>

<pallas_src>
import functools
import math

import jax
import jax.numpy as jnp
from jax.experimental import pallas as pl
from jax.experimental.pallas import tpu as pltpu

# ----------------------------- model dims ----------------------------------
B = 2            # batch
L = 8            # input sequence length
D = 32           # d_model
F = 6            # continuous time-feature dim
NUM_ROADS = 16   # road-classification classes (and road embedding table size)
NUM_TIMES = 24   # time-id embedding table size
FFN = 64         # feed-forward hidden dim
NUM_MASK = 2     # number of masked positions -> 2*NUM_MASK special tokens
TIME_OUT = F     # time_reg head output dim
STATE_OUT = 1    # state_reg head output dim

LANE = 128
HEAD_W = NUM_ROADS + TIME_OUT + STATE_OUT   # 23 real head columns
HEAD_PAD = LANE                             # padded to 128 for lane-dense store

# ---------------- narrow (32-lane) parameter slab layout ---------------------
# Rows 0..55 are the fused-tokenizer weight matrix (one matmul builds the full
# token sequence incl. special tokens, tokenizer bias and feature projection).
EMB_ROAD = 0                          # (16, 32) road embedding
EMB_TIME = EMB_ROAD + NUM_ROADS       # (24, 32) time embedding
EMB_WTF = EMB_TIME + NUM_TIMES        # ( 6, 32) time-feature projection (rows 40..45)
EMB_SP = EMB_WTF + F                  # ( 2, 32) special tokens [cls,reg] (rows 46..47)
EMB_BTF = EMB_SP + 2                  # ( 1, 32) tokenizer bias           (row 48)
TOK_COLS = 56                         # fused tokenizer LHS width (rows 49..55 pad)
EMB_WO = TOK_COLS                     # (32, 32) attention output proj    (rows 56..87)
EMB_W2 = EMB_WO + D                   # (64, 32) FFN down proj            (rows 88..151)
EMB_ROWS = EMB_W2 + FFN               # 152 rows total

# ---------------- wide (128-lane) parameter slab layout ----------------------
WQKV_R = 0            # rows  0..31 : wq @ lanes 0..31, wk @ 32..63, wv @ 64..95
W1_R = D              # rows 32..63 : FFN up proj, lanes 0..63
WHD_R = 2 * D         # rows 64..95 : fused heads (clas|time|state), lanes 0..22
WIDE_ROWS = 3 * D

# ---------------- bias / layernorm slab (8, 128), one parameter per row ------
(VEC_LN1G, VEC_LN1B, VEC_LN2G, VEC_LN2B, VEC_B1, VEC_B2, VEC_BHD) = range(7)
VEC_ROWS = 8

# ---------------- packed activation input lanes (B*S, 64) --------------------
IN_TF = 40       # lanes 40..45 : time features            (real-token rows)
IN_CLS = 46      # lane 46      : cls-token selector        (special rows)
IN_REG = 47      # lane 47      : reg-token selector        (special rows)
IN_BIAS = 48     # lane 48      : tokenizer-bias selector   (real-token rows)
IN_RID = 56      # lane 56      : road id as f32 (-1 on special rows)
IN_TID = 57      # lane 57      : time id as f32 (-1 on special rows)
IN_MSK = 58      # lane 58      : mask (1 keep / 0 zero; 1 on special rows)
IN_LANES = 64


# ------------------------------ kernel --------------------------------------
def _layernorm(x, g, b, eps=1e-5):
    mu = jnp.mean(x, axis=-1, keepdims=True)
    var = jnp.mean((x - mu) ** 2, axis=-1, keepdims=True)
    return (x - mu) * jax.lax.rsqrt(var + eps) * g + b


def _make_kernel(Bb, Ll, num_mask):
    nsp = 2 * num_mask
    BL = Bb * Ll
    BS = BL + Bb * nsp
    inv_sqrt_d = 1.0 / math.sqrt(D)
    neg_inf = -1e30

    def kernel(in_ref, emb_ref, wide_ref, vec_ref, out_ref):
        # ---- parameter slab windows (each read once, aligned rows) ----
        w_tok = emb_ref[0:TOK_COLS, :]                       # (56, 32)
        wo = emb_ref[EMB_WO:EMB_WO + D, :]                   # (32, 32)
        w2 = emb_ref[EMB_W2:EMB_W2 + FFN, :]                 # (64, 32)
        wqkv = wide_ref[WQKV_R:WQKV_R + D, :]                # (32, 128)
        w1 = wide_ref[W1_R:W1_R + D, 0:FFN]                  # (32, 64)
        w_head = wide_ref[WHD_R:WHD_R + D, :]                # (32, 128)

        vec = vec_ref[...]                                   # one full-tile load
        ln1_g = vec[VEC_LN1G:VEC_LN1G + 1, 0:D]
        ln1_b = vec[VEC_LN1B:VEC_LN1B + 1, 0:D]
        ln2_g = vec[VEC_LN2G:VEC_LN2G + 1, 0:D]
        ln2_b = vec[VEC_LN2B:VEC_LN2B + 1, 0:D]
        b1 = vec[VEC_B1:VEC_B1 + 1, 0:FFN]
        b2 = vec[VEC_B2:VEC_B2 + 1, 0:D]
        b_head = vec[VEC_BHD:VEC_BHD + 1, :]

        inp = in_ref[...]                                    # (BS, 64)

        # ---- fused tokenizer: road/time one-hots + feature proj + bias +
        #      special tokens in ONE matmul, then masked_fill ----
        rid = inp[:, IN_RID:IN_RID + 1].astype(jnp.int32)    # (BS, 1)
        tid = inp[:, IN_TID:IN_TID + 1].astype(jnp.int32)
        mskf = inp[:, IN_MSK:IN_MSK + 1]                     # (BS, 1)
        col = jax.lax.broadcasted_iota(jnp.int32, (BS, TOK_COLS), 1)
        onehot = ((col == rid).astype(jnp.float32)
                  + ((col - NUM_ROADS) == tid).astype(jnp.float32))
        lhs = inp[:, 0:TOK_COLS] + onehot                    # (BS, 56)
        x = jnp.dot(lhs, w_tok, preferred_element_type=jnp.float32) * mskf  # (BS, 32)

        # ---- pre-LN single-head self-attention over all batches at once;
        #      block-diagonal score mask keeps batches independent ----
        # TODO(synk): attention is unmasked over zeroed (masked) positions,
        # matching the synthesized Backbone of the original translation.
        h = _layernorm(x, ln1_g, ln1_b)
        qkv = jnp.dot(h, wqkv, preferred_element_type=jnp.float32)   # (BS, 128)
        q = qkv[:, 0:D]
        k = qkv[:, D:2 * D]
        v = qkv[:, 2 * D:3 * D]
        s = jax.lax.dot_general(q, k, (((1,), (1,)), ((), ())),
                                preferred_element_type=jnp.float32) * inv_sqrt_d

        r_io = jax.lax.broadcasted_iota(jnp.int32, (BS, BS), 0)
        c_io = jax.lax.broadcasted_iota(jnp.int32, (BS, BS), 1)
        same = None
        for b in range(Bb):   # tiny static loop of compares (VPU only)
            r_in = (((r_io >= b * Ll) & (r_io < (b + 1) * Ll))
                    | ((r_io >= BL + b * nsp) & (r_io < BL + (b + 1) * nsp)))
            c_in = (((c_io >= b * Ll) & (c_io < (b + 1) * Ll))
                    | ((c_io >= BL + b * nsp) & (c_io < BL + (b + 1) * nsp)))
            blk = r_in & c_in
            same = blk if same is None else (same | blk)
        s = jnp.where(same, s, neg_inf)

        s = s - jnp.max(s, axis=-1, keepdims=True)
        p = jnp.exp(s)
        attn = p * pl.reciprocal(jnp.sum(p, axis=-1, keepdims=True), approx=True)
        ctx = jnp.dot(attn, v, preferred_element_type=jnp.float32)   # (BS, 32)
        x = x + jnp.dot(ctx, wo, preferred_element_type=jnp.float32)

        # ---- pre-LN feed-forward ----
        h2 = _layernorm(x, ln2_g, ln2_b)
        ff = jnp.maximum(jnp.dot(h2, w1, preferred_element_type=jnp.float32) + b1, 0.0)
        x = x + jnp.dot(ff, w2, preferred_element_type=jnp.float32) + b2

        # ---- fused task heads on special-token rows only; one (8,128) store ----
        head_in = x[BL:BS, :]                                # (B*2nm, 32), aligned
        out_ref[...] = (jnp.dot(head_in, w_head, preferred_element_type=jnp.float32)
                        + b_head)

    return kernel


# ------------------------------ wrapper --------------------------------------
@functools.partial(jax.jit, static_argnames=("num_mask",))
def bigcity_forward(params, road_id, time_id, time_feat, mask, num_mask):
    Bb, Ll = road_id.shape
    nsp = 2 * num_mask
    BL = Bb * Ll
    BS = BL + Bb * nsp
    kernel = _make_kernel(Bb, Ll, num_mask)

    # One lane-packed activation input: ids / mask / time features / special
    # selectors in a single (BS, 64) f32 slab (single DMA). ids < 2^24 so the
    # f32 round-trip is exact.
    packed = jnp.zeros((BS, IN_LANES), jnp.float32)
    packed = packed.at[0:BL, IN_TF:IN_TF + F].set(
        time_feat.astype(jnp.float32).reshape(BL, F))
    packed = packed.at[0:BL, IN_BIAS].set(1.0)
    packed = packed.at[0:BL, IN_RID].set(road_id.reshape(BL).astype(jnp.float32))
    packed = packed.at[0:BL, IN_TID].set(time_id.reshape(BL).astype(jnp.float32))
    packed = packed.at[0:BL, IN_MSK].set(mask.reshape(BL).astype(jnp.float32))
    sp_even = (jnp.arange(Bb * nsp) % 2 == 0).astype(jnp.float32)   # [cls,reg,...]
    packed = packed.at[BL:BS, IN_CLS].set(sp_even)
    packed = packed.at[BL:BS, IN_REG].set(1.0 - sp_even)
    packed = packed.at[BL:BS, IN_RID].set(-1.0)
    packed = packed.at[BL:BS, IN_TID].set(-1.0)
    packed = packed.at[BL:BS, IN_MSK].set(1.0)

    vmem = pl.BlockSpec(memory_space=pltpu.MemorySpace.VMEM)
    head_out = pl.pallas_call(
        kernel,
        out_shape=jax.ShapeDtypeStruct((Bb * nsp, HEAD_PAD), jnp.float32),
        in_specs=[vmem, vmem, vmem, vmem],
        out_specs=vmem,
    )(packed, params["emb_slab"], params["wide_slab"], params["vec_slab"])

    head_out = head_out.reshape(Bb, nsp, HEAD_PAD)
    # clas tokens at even special offsets, reg tokens at odd special offsets.
    clas_out = head_out[:, 0::2, 0:NUM_ROADS]
    time_out = head_out[:, 1::2, NUM_ROADS:NUM_ROADS + TIME_OUT]
    state_out = head_out[:, 1::2,
                         NUM_ROADS + TIME_OUT:NUM_ROADS + TIME_OUT + STATE_OUT]
    return clas_out, time_out, state_out


# ------------------------------ params ---------------------------------------
def init_params(key):
    ks = jax.random.split(key, 13)
    n = lambda k, shape, s=0.02: (s * jax.random.normal(k, shape)).astype(jnp.float32)

    road_emb = n(ks[0], (NUM_ROADS, D))
    time_emb = n(ks[1], (NUM_TIMES, D))
    w_tf = n(ks[2], (F, D))
    special = n(ks[3], (2, D))
    wq = n(ks[4], (D, D)); wk = n(ks[5], (D, D)); wv = n(ks[6], (D, D)); wo = n(ks[7], (D, D))
    w1 = n(ks[8], (D, FFN)); w2 = n(ks[9], (FFN, D))
    w_clas = n(ks[10], (D, NUM_ROADS))
    w_time = n(ks[11], (D, TIME_OUT))
    w_state = n(ks[12], (D, STATE_OUT))

    b_tf = jnp.zeros((D,), jnp.float32)
    ln1_g = jnp.ones((D,), jnp.float32); ln1_b = jnp.zeros((D,), jnp.float32)
    ln2_g = jnp.ones((D,), jnp.float32); ln2_b = jnp.zeros((D,), jnp.float32)
    b1 = jnp.zeros((FFN,), jnp.float32); b2 = jnp.zeros((D,), jnp.float32)
    b_clas = jnp.zeros((NUM_ROADS,), jnp.float32)
    b_time = jnp.zeros((TIME_OUT,), jnp.float32)
    b_state = jnp.zeros((STATE_OUT,), jnp.float32)

    # ---- narrow (32-lane) slab: fused tokenizer rows 0..55, then wo, w2 ----
    emb = jnp.zeros((EMB_ROWS, D), jnp.float32)
    emb = emb.at[EMB_ROAD:EMB_ROAD + NUM_ROADS].set(road_emb)
    emb = emb.at[EMB_TIME:EMB_TIME + NUM_TIMES].set(time_emb)
    emb = emb.at[EMB_WTF:EMB_WTF + F].set(w_tf)
    emb = emb.at[EMB_SP:EMB_SP + 2].set(special)
    emb = emb.at[EMB_BTF].set(b_tf)
    emb = emb.at[EMB_WO:EMB_WO + D].set(wo)
    emb = emb.at[EMB_W2:EMB_W2 + FFN].set(w2)

    # ---- wide slab (96, 128): QKV at lane offsets 0/32/64, FFN up, fused heads ----
    wide = jnp.zeros((WIDE_ROWS, LANE), jnp.float32)
    wide = wide.at[WQKV_R:WQKV_R + D, 0:D].set(wq)
    wide = wide.at[WQKV_R:WQKV_R + D, D:2 * D].set(wk)
    wide = wide.at[WQKV_R:WQKV_R + D, 2 * D:3 * D].set(wv)
    wide = wide.at[W1_R:W1_R + D, 0:FFN].set(w1)
    wide = wide.at[WHD_R:WHD_R + D, 0:NUM_ROADS].set(w_clas)
    wide = wide.at[WHD_R:WHD_R + D, NUM_ROADS:NUM_ROADS + TIME_OUT].set(w_time)
    wide = wide.at[WHD_R:WHD_R + D,
                   NUM_ROADS + TIME_OUT:NUM_ROADS + TIME_OUT + STATE_OUT].set(w_state)

    # ---- bias / layernorm slab (8, 128) ----
    vec = jnp.zeros((VEC_ROWS, LANE), jnp.float32)
    vec = vec.at[VEC_LN1G, 0:D].set(ln1_g)
    vec = vec.at[VEC_LN1B, 0:D].set(ln1_b)
    vec = vec.at[VEC_LN2G, 0:D].set(ln2_g)
    vec = vec.at[VEC_LN2B, 0:D].set(ln2_b)
    vec = vec.at[VEC_B1, 0:FFN].set(b1)
    vec = vec.at[VEC_B2, 0:D].set(b2)
    vec = vec.at[VEC_BHD, 0:NUM_ROADS].set(b_clas)
    vec = vec.at[VEC_BHD, NUM_ROADS:NUM_ROADS + TIME_OUT].set(b_time)
    vec = vec.at[VEC_BHD,
                 NUM_ROADS + TIME_OUT:NUM_ROADS + TIME_OUT + STATE_OUT].set(b_state)

    return {"emb_slab": emb, "wide_slab": wide, "vec_slab": vec}


# ------------------------------ main ------------------------------------------
if __name__ == "__main__":
    key = jax.random.PRNGKey(0)
    k1, k2, k3, kp = jax.random.split(key, 4)

    batch_road_id = jax.random.randint(k1, (B, L), 0, NUM_ROADS)
    batch_time_id = jax.random.randint(k2, (B, L), 0, NUM_TIMES)
    batch_time_features = jax.random.normal(k3, (B, L, F), jnp.float32)
    # mask: 0 at masked positions (to be zeroed), 1 elsewhere; NUM_MASK zeros/row
    mask = jnp.ones((B, L), jnp.int32)
    mask = mask.at[:, :NUM_MASK].set(0)

    params = init_params(kp)

    clas_out, time_out, state_out = bigcity_forward(
        params, batch_road_id, batch_time_id, batch_time_features, mask, NUM_MASK)
    jax.block_until_ready((clas_out, time_out, state_out))

    assert clas_out.shape == (B, NUM_MASK, NUM_ROADS)
    assert time_out.shape == (B, NUM_MASK, TIME_OUT)
    assert state_out.shape == (B, NUM_MASK, STATE_OUT)
    assert bool(jnp.all(jnp.isfinite(clas_out)))
    assert bool(jnp.all(jnp.isfinite(time_out)))
    assert bool(jnp.all(jnp.isfinite(state_out)))
    print("KERNEL_OK")
</pallas_src>

<mosaic_0001>
module attributes {stable_mosaic.version = 11 : i64} {
  func.func @kernel(%arg0: memref<24x64xf32, #tpu.memory_space<vmem>>, %arg1: memref<152x32xf32, #tpu.memory_space<vmem>>, %arg2: memref<96x128xf32, #tpu.memory_space<vmem>>, %arg3: memref<8x128xf32, #tpu.memory_space<vmem>>, %arg4: memref<8x128xf32, #tpu.memory_space<vmem>>) attributes {dimension_semantics = [], scalar_prefetch = 0 : i64, scratch_operands = 0 : i64, tpu.core_type = #tpu.core_type<tc>} {
    %c0 = arith.constant 0 : index
    %c0_0 = arith.constant 0 : index
    %0 = vector.load %arg1[%c0, %c0_0] : memref<152x32xf32, #tpu.memory_space<vmem>>, vector<56x32xf32>
    %c56 = arith.constant 56 : index
    %c0_1 = arith.constant 0 : index
    %1 = vector.load %arg1[%c56, %c0_1] : memref<152x32xf32, #tpu.memory_space<vmem>>, vector<32x32xf32>
    %c88 = arith.constant 88 : index
    %c0_2 = arith.constant 0 : index
    %2 = vector.load %arg1[%c88, %c0_2] : memref<152x32xf32, #tpu.memory_space<vmem>>, vector<64x32xf32>
    %c0_3 = arith.constant 0 : index
    %c0_4 = arith.constant 0 : index
    %3 = vector.load %arg2[%c0_3, %c0_4] : memref<96x128xf32, #tpu.memory_space<vmem>>, vector<32x128xf32>
    %c32 = arith.constant 32 : index
    %c0_5 = arith.constant 0 : index
    %4 = vector.load %arg2[%c32, %c0_5] : memref<96x128xf32, #tpu.memory_space<vmem>>, vector<32x64xf32>
    %c64 = arith.constant 64 : index
    %c0_6 = arith.constant 0 : index
    %5 = vector.load %arg2[%c64, %c0_6] : memref<96x128xf32, #tpu.memory_space<vmem>>, vector<32x128xf32>
    %c0_7 = arith.constant 0 : index
    %c0_8 = arith.constant 0 : index
    %6 = vector.load %arg3[%c0_7, %c0_8] : memref<8x128xf32, #tpu.memory_space<vmem>>, vector<8x128xf32>
    %7 = vector.extract_strided_slice %6 {offsets = [0, 0], sizes = [1, 32], strides = [1, 1]} : vector<8x128xf32> to vector<1x32xf32>
    %8 = vector.extract_strided_slice %6 {offsets = [1, 0], sizes = [1, 32], strides = [1, 1]} : vector<8x128xf32> to vector<1x32xf32>
    %9 = vector.extract_strided_slice %6 {offsets = [2, 0], sizes = [1, 32], strides = [1, 1]} : vector<8x128xf32> to vector<1x32xf32>
    %10 = vector.extract_strided_slice %6 {offsets = [3, 0], sizes = [1, 32], strides = [1, 1]} : vector<8x128xf32> to vector<1x32xf32>
    %11 = vector.extract_strided_slice %6 {offsets = [4, 0], sizes = [1, 64], strides = [1, 1]} : vector<8x128xf32> to vector<1x64xf32>
    %12 = vector.extract_strided_slice %6 {offsets = [5, 0], sizes = [1, 32], strides = [1, 1]} : vector<8x128xf32> to vector<1x32xf32>
    %13 = vector.extract_strided_slice %6 {offsets = [6, 0], sizes = [1, 128], strides = [1, 1]} : vector<8x128xf32> to vector<1x128xf32>
    %c0_9 = arith.constant 0 : index
    %c0_10 = arith.constant 0 : index
    %14 = vector.load %arg0[%c0_9, %c0_10] : memref<24x64xf32, #tpu.memory_space<vmem>>, vector<24x64xf32>
    %15 = vector.extract_strided_slice %14 {offsets = [0, 56], sizes = [24, 1], strides = [1, 1]} : vector<24x64xf32> to vector<24x1xf32>
    %16 = arith.fptosi %15 : vector<24x1xf32> to vector<24x1xi32>
    %17 = vector.extract_strided_slice %14 {offsets = [0, 57], sizes = [24, 1], strides = [1, 1]} : vector<24x64xf32> to vector<24x1xf32>
    %18 = arith.fptosi %17 : vector<24x1xf32> to vector<24x1xi32>
    %19 = vector.extract_strided_slice %14 {offsets = [0, 58], sizes = [24, 1], strides = [1, 1]} : vector<24x64xf32> to vector<24x1xf32>
    %20 = tpu.iota {dimensions = array<i32: 1>} : vector<24x56xi32>
    %21 = vector.broadcast %16 : vector<24x1xi32> to vector<24x56xi32>
    %22 = arith.cmpi eq, %20, %21 : vector<24x56xi32>
    %23 = arith.extui %22 : vector<24x56xi1> to vector<24x56xi32>
    %24 = arith.sitofp %23 : vector<24x56xi32> to vector<24x56xf32>
    %c16_i32 = arith.constant 16 : i32
    %25 = vector.broadcast %c16_i32 : i32 to vector<24x56xi32>
    %26 = arith.subi %20, %25 : vector<24x56xi32>
    %27 = vector.broadcast %18 : vector<24x1xi32> to vector<24x56xi32>
    %28 = arith.cmpi eq, %26, %27 : vector<24x56xi32>
    %29 = arith.extui %28 : vector<24x56xi1> to vector<24x56xi32>
    %30 = arith.sitofp %29 : vector<24x56xi32> to vector<24x56xf32>
    %31 = arith.addf %24, %30 : vector<24x56xf32>
    %32 = vector.extract_strided_slice %14 {offsets = [0, 0], sizes = [24, 56], strides = [1, 1]} : vector<24x64xf32> to vector<24x56xf32>
    %33 = arith.addf %32, %31 : vector<24x56xf32>
    %cst = arith.constant dense<0.000000e+00> : vector<24x32xf32>
    %34 = tpu.matmul %33, %0, %cst {dimension_numbers = #tpu.dot_dimension_numbers<[1], [0], [0], [1], [0, 0, 1, 1], [], []>} : vector<24x56xf32>, vector<56x32xf32>, vector<24x32xf32> -> vector<24x32xf32>
    %35 = vector.broadcast %19 : vector<24x1xf32> to vector<24x32xf32>
    %36 = arith.mulf %34, %35 : vector<24x32xf32>
    %cst_11 = arith.constant dense<0.000000e+00> : vector<24xf32>
    %37 = vector.multi_reduction <add>, %36, %cst_11 [1] : vector<24x32xf32> to vector<24xf32>
    %38 = vector.shape_cast %37 : vector<24xf32> to vector<24x1xf32>
    %cst_12 = arith.constant 3.200000e+01 : f32
    %39 = vector.broadcast %cst_12 : f32 to vector<24x1xf32>
    %40 = arith.divf %38, %39 : vector<24x1xf32>
    %41 = vector.broadcast %40 : vector<24x1xf32> to vector<24x32xf32>
    %42 = arith.subf %36, %41 : vector<24x32xf32>
    %43 = arith.mulf %42, %42 : vector<24x32xf32>
    %cst_13 = arith.constant dense<0.000000e+00> : vector<24xf32>
    %44 = vector.multi_reduction <add>, %43, %cst_13 [1] : vector<24x32xf32> to vector<24xf32>
    %45 = vector.shape_cast %44 : vector<24xf32> to vector<24x1xf32>
    %cst_14 = arith.constant 3.200000e+01 : f32
    %46 = vector.broadcast %cst_14 : f32 to vector<24x1xf32>
    %47 = arith.divf %45, %46 : vector<24x1xf32>
    %48 = vector.broadcast %40 : vector<24x1xf32> to vector<24x32xf32>
    %49 = arith.subf %36, %48 : vector<24x32xf32>
    %cst_15 = arith.constant 9.99999974E-6 : f32
    %50 = vector.broadcast %cst_15 : f32 to vector<24x1xf32>
    %51 = arith.addf %47, %50 : vector<24x1xf32>
    %52 = math.rsqrt %51 : vector<24x1xf32>
    %53 = vector.broadcast %52 : vector<24x1xf32> to vector<24x32xf32>
    %54 = arith.mulf %49, %53 : vector<24x32xf32>
    %55 = vector.broadcast %7 : vector<1x32xf32> to vector<24x32xf32>
    %56 = arith.mulf %54, %55 : vector<24x32xf32>
    %57 = vector.broadcast %8 : vector<1x32xf32> to vector<24x32xf32>
    %58 = arith.addf %56, %57 : vector<24x32xf32>
    %cst_16 = arith.constant dense<0.000000e+00> : vector<24x128xf32>
    %59 = tpu.matmul %58, %3, %cst_16 {dimension_numbers = #tpu.dot_dimension_numbers<[1], [0], [0], [1], [0, 0, 1, 1], [], []>} : vector<24x32xf32>, vector<32x128xf32>, vector<24x128xf32> -> vector<24x128xf32>
    %60 = vector.extract_strided_slice %59 {offsets = [0, 0], sizes = [24, 32], strides = [1, 1]} : vector<24x128xf32> to vector<24x32xf32>
    %61 = vector.extract_strided_slice %59 {offsets = [0, 32], sizes = [24, 32], strides = [1, 1]} : vector<24x128xf32> to vector<24x32xf32>
    %62 = vector.extract_strided_slice %59 {offsets = [0, 64], sizes = [24, 32], strides = [1, 1]} : vector<24x128xf32> to vector<24x32xf32>
    %cst_17 = arith.constant dense<0.000000e+00> : vector<24x24xf32>
    %63 = tpu.matmul %60, %61, %cst_17 {dimension_numbers = #tpu.dot_dimension_numbers<[1], [1], [0], [0], [0, 0, 1, 0], [], []>} : vector<24x32xf32>, vector<24x32xf32>, vector<24x24xf32> -> vector<24x24xf32>
    %cst_18 = arith.constant 0.176776692 : f32
    %64 = vector.broadcast %cst_18 : f32 to vector<24x24xf32>
    %65 = arith.mulf %63, %64 : vector<24x24xf32>
    %66 = tpu.iota {dimensions = array<i32: 0>} : vector<24x24xi32>
    %67 = tpu.iota {dimensions = array<i32: 1>} : vector<24x24xi32>
    %c0_i32 = arith.constant 0 : i32
    %68 = vector.broadcast %c0_i32 : i32 to vector<24x24xi32>
    %69 = arith.cmpi sge, %66, %68 : vector<24x24xi32>
    %c8_i32 = arith.constant 8 : i32
    %70 = vector.broadcast %c8_i32 : i32 to vector<24x24xi32>
    %71 = arith.cmpi slt, %66, %70 : vector<24x24xi32>
    %72 = arith.andi %69, %71 : vector<24x24xi1>
    %c16_i32_19 = arith.constant 16 : i32
    %73 = vector.broadcast %c16_i32_19 : i32 to vector<24x24xi32>
    %74 = arith.cmpi sge, %66, %73 : vector<24x24xi32>
    %c20_i32 = arith.constant 20 : i32
    %75 = vector.broadcast %c20_i32 : i32 to vector<24x24xi32>
    %76 = arith.cmpi slt, %66, %75 : vector<24x24xi32>
    %77 = arith.andi %74, %76 : vector<24x24xi1>
    %78 = arith.ori %72, %77 : vector<24x24xi1>
    %c0_i32_20 = arith.constant 0 : i32
    %79 = vector.broadcast %c0_i32_20 : i32 to vector<24x24xi32>
    %80 = arith.cmpi sge, %67, %79 : vector<24x24xi32>
    %c8_i32_21 = arith.constant 8 : i32
    %81 = vector.broadcast %c8_i32_21 : i32 to vector<24x24xi32>
    %82 = arith.cmpi slt, %67, %81 : vector<24x24xi32>
    %83 = arith.andi %80, %82 : vector<24x24xi1>
    %c16_i32_22 = arith.constant 16 : i32
    %84 = vector.broadcast %c16_i32_22 : i32 to vector<24x24xi32>
    %85 = arith.cmpi sge, %67, %84 : vector<24x24xi32>
    %c20_i32_23 = arith.constant 20 : i32
    %86 = vector.broadcast %c20_i32_23 : i32 to vector<24x24xi32>
    %87 = arith.cmpi slt, %67, %86 : vector<24x24xi32>
    %88 = arith.andi %85, %87 : vector<24x24xi1>
    %89 = arith.ori %83, %88 : vector<24x24xi1>
    %90 = arith.andi %78, %89 : vector<24x24xi1>
    %c8_i32_24 = arith.constant 8 : i32
    %91 = vector.broadcast %c8_i32_24 : i32 to vector<24x24xi32>
    %92 = arith.cmpi sge, %66, %91 : vector<24x24xi32>
    %c16_i32_25 = arith.constant 16 : i32
    %93 = vector.broadcast %c16_i32_25 : i32 to vector<24x24xi32>
    %94 = arith.cmpi slt, %66, %93 : vector<24x24xi32>
    %95 = arith.andi %92, %94 : vector<24x24xi1>
    %c20_i32_26 = arith.constant 20 : i32
    %96 = vector.broadcast %c20_i32_26 : i32 to vector<24x24xi32>
    %97 = arith.cmpi sge, %66, %96 : vector<24x24xi32>
    %c24_i32 = arith.constant 24 : i32
    %98 = vector.broadcast %c24_i32 : i32 to vector<24x24xi32>
    %99 = arith.cmpi slt, %66, %98 : vector<24x24xi32>
    %100 = arith.andi %97, %99 : vector<24x24xi1>
    %101 = arith.ori %95, %100 : vector<24x24xi1>
    %c8_i32_27 = arith.constant 8 : i32
    %102 = vector.broadcast %c8_i32_27 : i32 to vector<24x24xi32>
    %103 = arith.cmpi sge, %67, %102 : vector<24x24xi32>
    %c16_i32_28 = arith.constant 16 : i32
    %104 = vector.broadcast %c16_i32_28 : i32 to vector<24x24xi32>
    %105 = arith.cmpi slt, %67, %104 : vector<24x24xi32>
    %106 = arith.andi %103, %105 : vector<24x24xi1>
    %c20_i32_29 = arith.constant 20 : i32
    %107 = vector.broadcast %c20_i32_29 : i32 to vector<24x24xi32>
    %108 = arith.cmpi sge, %67, %107 : vector<24x24xi32>
    %c24_i32_30 = arith.constant 24 : i32
    %109 = vector.broadcast %c24_i32_30 : i32 to vector<24x24xi32>
    %110 = arith.cmpi slt, %67, %109 : vector<24x24xi32>
    %111 = arith.andi %108, %110 : vector<24x24xi1>
    %112 = arith.ori %106, %111 : vector<24x24xi1>
    %113 = arith.andi %101, %112 : vector<24x24xi1>
    %114 = arith.ori %90, %113 : vector<24x24xi1>
    %cst_31 = arith.constant -1.000000e+30 : f32
    %115 = vector.broadcast %cst_31 : f32 to vector<24x24xf32>
    %116 = arith.select %114, %65, %115 : vector<24x24xi1>, vector<24x24xf32>
    %cst_32 = arith.constant dense<0xFF800000> : vector<24xf32>
    %117 = vector.multi_reduction <maximumf>, %116, %cst_32 [1] : vector<24x24xf32> to vector<24xf32>
    %118 = vector.shape_cast %117 : vector<24xf32> to vector<24x1xf32>
    %119 = vector.broadcast %118 : vector<24x1xf32> to vector<24x24xf32>
    %120 = arith.subf %116, %119 : vector<24x24xf32>
    %121 = math.exp %120 : vector<24x24xf32>
    %cst_33 = arith.constant dense<0.000000e+00> : vector<24xf32>
    %122 = vector.multi_reduction <add>, %121, %cst_33 [1] : vector<24x24xf32> to vector<24xf32>
    %123 = vector.shape_cast %122 : vector<24xf32> to vector<24x1xf32>
    %124 = tpu.reciprocal %123 {approx = true} : vector<24x1xf32> -> vector<24x1xf32>
    %125 = vector.broadcast %124 : vector<24x1xf32> to vector<24x24xf32>
    %126 = arith.mulf %121, %125 : vector<24x24xf32>
    %cst_34 = arith.constant dense<0.000000e+00> : vector<24x32xf32>
    %127 = tpu.matmul %126, %62, %cst_34 {dimension_numbers = #tpu.dot_dimension_numbers<[1], [0], [0], [1], [0, 0, 1, 1], [], []>} : vector<24x24xf32>, vector<24x32xf32>, vector<24x32xf32> -> vector<24x32xf32>
    %cst_35 = arith.constant dense<0.000000e+00> : vector<24x32xf32>
    %128 = tpu.matmul %127, %1, %cst_35 {dimension_numbers = #tpu.dot_dimension_numbers<[1], [0], [0], [1], [0, 0, 1, 1], [], []>} : vector<24x32xf32>, vector<32x32xf32>, vector<24x32xf32> -> vector<24x32xf32>
    %129 = arith.addf %36, %128 : vector<24x32xf32>
    %cst_36 = arith.constant dense<0.000000e+00> : vector<24xf32>
    %130 = vector.multi_reduction <add>, %129, %cst_36 [1] : vector<24x32xf32> to vector<24xf32>
    %131 = vector.shape_cast %130 : vector<24xf32> to vector<24x1xf32>
    %cst_37 = arith.constant 3.200000e+01 : f32
    %132 = vector.broadcast %cst_37 : f32 to vector<24x1xf32>
    %133 = arith.divf %131, %132 : vector<24x1xf32>
    %134 = vector.broadcast %133 : vector<24x1xf32> to vector<24x32xf32>
    %135 = arith.subf %129, %134 : vector<24x32xf32>
    %136 = arith.mulf %135, %135 : vector<24x32xf32>
    %cst_38 = arith.constant dense<0.000000e+00> : vector<24xf32>
    %137 = vector.multi_reduction <add>, %136, %cst_38 [1] : vector<24x32xf32> to vector<24xf32>
    %138 = vector.shape_cast %137 : vector<24xf32> to vector<24x1xf32>
    %cst_39 = arith.constant 3.200000e+01 : f32
    %139 = vector.broadcast %cst_39 : f32 to vector<24x1xf32>
    %140 = arith.divf %138, %139 : vector<24x1xf32>
    %141 = vector.broadcast %133 : vector<24x1xf32> to vector<24x32xf32>
    %142 = arith.subf %129, %141 : vector<24x32xf32>
    %cst_40 = arith.constant 9.99999974E-6 : f32
    %143 = vector.broadcast %cst_40 : f32 to vector<24x1xf32>
    %144 = arith.addf %140, %143 : vector<24x1xf32>
    %145 = math.rsqrt %144 : vector<24x1xf32>
    %146 = vector.broadcast %145 : vector<24x1xf32> to vector<24x32xf32>
    %147 = arith.mulf %142, %146 : vector<24x32xf32>
    %148 = vector.broadcast %9 : vector<1x32xf32> to vector<24x32xf32>
    %149 = arith.mulf %147, %148 : vector<24x32xf32>
    %150 = vector.broadcast %10 : vector<1x32xf32> to vector<24x32xf32>
    %151 = arith.addf %149, %150 : vector<24x32xf32>
    %cst_41 = arith.constant dense<0.000000e+00> : vector<24x64xf32>
    %152 = tpu.matmul %151, %4, %cst_41 {dimension_numbers = #tpu.dot_dimension_numbers<[1], [0], [0], [1], [0, 0, 1, 1], [], []>} : vector<24x32xf32>, vector<32x64xf32>, vector<24x64xf32> -> vector<24x64xf32>
    %153 = vector.broadcast %11 : vector<1x64xf32> to vector<24x64xf32>
    %154 = arith.addf %152, %153 : vector<24x64xf32>
    %cst_42 = arith.constant 0.000000e+00 : f32
    %155 = vector.broadcast %cst_42 : f32 to vector<24x64xf32>
    %156 = arith.maximumf %154, %155 : vector<24x64xf32>
    %cst_43 = arith.constant dense<0.000000e+00> : vector<24x32xf32>
    %157 = tpu.matmul %156, %2, %cst_43 {dimension_numbers = #tpu.dot_dimension_numbers<[1], [0], [0], [1], [0, 0, 1, 1], [], []>} : vector<24x64xf32>, vector<64x32xf32>, vector<24x32xf32> -> vector<24x32xf32>
    %158 = arith.addf %129, %157 : vector<24x32xf32>
    %159 = vector.broadcast %12 : vector<1x32xf32> to vector<24x32xf32>
    %160 = arith.addf %158, %159 : vector<24x32xf32>
    %161 = vector.extract_strided_slice %160 {offsets = [16, 0], sizes = [8, 32], strides = [1, 1]} : vector<24x32xf32> to vector<8x32xf32>
    %cst_44 = arith.constant dense<0.000000e+00> : vector<8x128xf32>
    %162 = tpu.matmul %161, %5, %cst_44 {dimension_numbers = #tpu.dot_dimension_numbers<[1], [0], [0], [1], [0, 0, 1, 1], [], []>} : vector<8x32xf32>, vector<32x128xf32>, vector<8x128xf32> -> vector<8x128xf32>
    %163 = vector.broadcast %13 : vector<1x128xf32> to vector<8x128xf32>
    %164 = arith.addf %162, %163 : vector<8x128xf32>
    %c0_45 = arith.constant 0 : index
    %c0_46 = arith.constant 0 : index
    %165 = vector.load %arg4[%c0_45, %c0_46] : memref<8x128xf32, #tpu.memory_space<vmem>>, vector<8x128xf32>
    tpu.vector_store %arg4[%c0_45, %c0_46], %164 {strides = array<i32>} : memref<8x128xf32, #tpu.memory_space<vmem>>, vector<8x128xf32>,
    return
  }
}

</mosaic_0001>

<llo_original>
// kernel: bigcity_forward.1
$region0: #{bigcity_forward.1}
  #allocation0 [shape = 'u32[]', space=smem, size = 0x4, offset = 0x4, fixed_abs, tag = 'smem constant byte address 0x4 - core index']
  #allocation1 [shape = 'u32[144,128]{1,0:T(1,128)}', space=vmem, size = 0x12000, scoped, tag = 'internal scratch']
  %s0 = inlined_call_operand.vmem [shape: f32[24,64], index: 0, kind: input, shape index: {}]
  %s1 = inlined_call_operand.vmem [shape: f32[152,32], index: 1, kind: input, shape index: {}]
  %s2 = inlined_call_operand.vmem [shape: f32[96,128], index: 2, kind: input, shape index: {}]
  %s3 = inlined_call_operand.vmem [shape: f32[8,128], index: 3, kind: input, shape index: {}]
  %s4 = inlined_call_operand.vmem [shape: f32[8,128], index: 4, kind: output, shape index: {}]
  %s5 = sld [smem:[#allocation0]]
  $region26: #{bigcity_forward.1} parent=0
    _
  %s7 = ssub.s32 1, %s5
  %s8 = scalar_select 0, %s7, %s5
  // Predicated region
  $region2: #{bigcity_forward.1} parent=0 // pred_check
    _
  $region3: #{bigcity_forward.1} parent=0 // pred_check_branch
    %10 = sbr.rel (0) target = $region5
  $region4: #{bigcity_forward.1} parent=0 // pred_region
    _
  $region5: #{bigcity_forward.1} parent=0 // pred_fallthru
    _
  // Predicated region
  $region6: #{bigcity_forward.1} parent=0 // pred_check
    _
  $region7: #{bigcity_forward.1} parent=0 // pred_check_branch
    %12 = sbr.rel (0) target = $region9
  $region8: #{bigcity_forward.1} parent=0 // pred_region
    _
  $region9: #{bigcity_forward.1} parent=0 // pred_fallthru
    _
  // Predicated region
  $region10: #{bigcity_forward.1} parent=0 // pred_check
    _
  $region11: #{bigcity_forward.1} parent=0 // pred_check_branch
    %14 = sbr.rel (0) target = $region13
  $region12: #{bigcity_forward.1} parent=0 // pred_region
    _
  $region13: #{bigcity_forward.1} parent=0 // pred_fallthru
    _
  // Predicated region
  $region14: #{bigcity_forward.1} parent=0 // pred_check
    _
  $region15: #{bigcity_forward.1} parent=0 // pred_check_branch
    %16 = sbr.rel (0) target = $region17
  $region16: #{bigcity_forward.1} parent=0 // pred_region
    _
  $region17: #{bigcity_forward.1} parent=0 // pred_fallthru
    _
  %v17 = vld [vmem:[%s1] sm:$0xff]
  %v18 = vld [vmem:[%s1 + $0x8] sm:$0xff]
  %v19 = vld [vmem:[%s1 + $0x10] sm:$0xff]
  %v20 = vld [vmem:[%s1 + $0x18] sm:$0xff]
  %v21 = vld [vmem:[%s1 + $0x20] sm:$0xff]
  %v22 = vld [vmem:[%s1 + $0x28] sm:$0xff]
  %v23 = vld [vmem:[%s1 + $0x30] sm:$0xff]
  %v24 = vld [vmem:[%s1 + $0x38] sm:$0xff]
  %v25 = vld [vmem:[%s1 + $0x40] sm:$0xff]
  %v26 = vld [vmem:[%s1 + $0x48] sm:$0xff]
  %v27 = vld [vmem:[%s1 + $0x50] sm:$0xff]
  %v28 = vld [vmem:[%s1 + $0x58] sm:$0xff]
  %v29 = vld [vmem:[%s1 + $0x60] sm:$0xff]
  %v30 = vld [vmem:[%s1 + $0x68] sm:$0xff]
  %v31 = vld [vmem:[%s1 + $0x70] sm:$0xff]
  %v32 = vld [vmem:[%s1 + $0x78] sm:$0xff]
  %v33 = vld [vmem:[%s1 + $0x80] sm:$0xff]
  %v34 = vld [vmem:[%s1 + $0x88] sm:$0xff]
  %v35 = vld [vmem:[%s1 + $0x90] sm:$0xff]
  %v36 = vld [vmem:[%s2] sm:$0xff]
  %v37 = vld [vmem:[%s2 + $0x8] sm:$0xff]
  %v38 = vld [vmem:[%s2 + $0x10] sm:$0xff]
  %v39 = vld [vmem:[%s2 + $0x18] sm:$0xff]
  %v40 = vld [vmem:[%s2 + $0x20] sm:$0xff]
  %v41 = vld [vmem:[%s2 + $0x28] sm:$0xff]
  %v42 = vld [vmem:[%s2 + $0x30] sm:$0xff]
  %v43 = vld [vmem:[%s2 + $0x38] sm:$0xff]
  %v44 = vld [vmem:[%s2 + $0x40] sm:$0xff]
  %v45 = vld [vmem:[%s2 + $0x48] sm:$0xff]
  %v46 = vld [vmem:[%s2 + $0x50] sm:$0xff]
  %v47 = vld [vmem:[%s2 + $0x58] sm:$0xff]
  %v48 = vld [vmem:[%s3] sm:$0xff]
  %v49 = vld [vmem:[%s0] sm:$0xff]
  %v50 = vld [vmem:[%s0 + $0x8] sm:$0xff]
  %v51 = vld [vmem:[%s0 + $0x10] sm:$0xff]
  %v52 = vcvt.f32.s32.to.zero.pseudo %v49
  %v53 = vcvt.f32.s32.to.zero.pseudo %v50
  %v54 = vcvt.f32.s32.to.zero.pseudo %v51
  %v55 = vlaneseq
  %v56 = vand.u32 %v55, 127
  %57 = vset.pattern.permute.xlu0 56
  %58 = vperm.xlu0 %57, %v52
  %v59 = vpop.permute.xlu0 %58
  %60 = vset.pattern.permute.xlu0 56
  %61 = vperm.xlu0 %60, %v53
  %v62 = vpop.permute.xlu0 %61
  %63 = vset.pattern.permute.xlu0 56
  %64 = vperm.xlu0 %63, %v54
  %v65 = vpop.permute.xlu0 %64
  %vm66 = vcmp.eq.s32.totalorder %v56, %v59
  %vm67 = vcmp.eq.s32.totalorder %v56, %v62
  %vm68 = vcmp.eq.s32.totalorder %v56, %v65
  %v69 = vsel %vm66, 1, 0
  %v70 = vsel %vm67, 1, 0
  %v71 = vsel %vm68, 1, 0
  %v72 = vcvt.s32.f32 %v69
  %v73 = vcvt.s32.f32 %v70
  %v74 = vcvt.s32.f32 %v71
  %v75 = vsub.s32 %v56, 16
  %76 = vset.pattern.permute.xlu0 57
  %77 = vperm.xlu0 %76, %v52
  %v78 = vpop.permute.xlu0 %77
  %79 = vset.pattern.permute.xlu0 57
  %80 = vperm.xlu0 %79, %v53
  %v81 = vpop.permute.xlu0 %80
  %82 = vset.pattern.permute.xlu0 57
  %83 = vperm.xlu0 %82, %v54
  %v84 = vpop.permute.xlu0 %83
  %vm85 = vcmp.eq.s32.totalorder %v75, %v78
  %vm86 = vcmp.eq.s32.totalorder %v75, %v81
  %vm87 = vcmp.eq.s32.totalorder %v75, %v84
  %v88 = vsel %vm85, 1, 0
  %v89 = vsel %vm86, 1, 0
  %v90 = vsel %vm87, 1, 0
  %v91 = vcvt.s32.f32 %v88
  %v92 = vcvt.s32.f32 %v89
  %v93 = vcvt.s32.f32 %v90
  %v94 = vadd.f32 %v72, %v91
  %v95 = vadd.f32 %v73, %v92
  %v96 = vadd.f32 %v74, %v93
  %v97 = vadd.f32 %v49, %v94
  %v98 = vadd.f32 %v50, %v95
  %v99 = vadd.f32 %v51, %v96
  %vm100 = vcmask 457728
  %v102 = vsel %vm100, %v97, 0
  %v105 = vsel %vm100, %v98, 0
  %v108 = vsel %vm100, %v99, 0
  %110 = vmatprep.subr.mxu0 0.0
  %111 = vmatpush1.msra.mxu0 %v17
  %112 = vmatprep.subr.mxu0 0.0
  %113 = vmatpush1.msra.mxu0 %v18
  %114 = vmatprep.subr.mxu0 0.0
  %115 = vmatpush1.msra.mxu0 %v19
  %116 = vmatprep.subr.mxu0 0.0
  %117 = vmatpush1.msra.mxu0 %v20
  %118 = vmatprep.subr.mxu0 0.0
  %119 = vmatpush1.msra.mxu0 %v21
  %120 = vmatprep.subr.mxu0 0.0
  %121 = vmatpush1.msra.mxu0 %v22
  %122 = vmatprep.subr.mxu0 0.0
  %123 = vmatpush1.msra.mxu0 %v23
  %124 = vmatprep.subr.mxu0 0.0
  %125 = vmatpush1.msra.mxu0 0.0
  %126 = vmatprep.subr.mxu0 0.0
  %127 = vmatpush1.msra.mxu0 0.0
  %128 = vmatprep.subr.mxu0 0.0
  %129 = vmatpush1.msra.mxu0 0.0
  %130 = vmatprep.subr.mxu0 0.0
  %131 = vmatpush1.msra.mxu0 0.0
  %132 = vmatprep.subr.mxu0 0.0
  %133 = vmatpush1.msra.mxu0 0.0
  %134 = vmatprep.subr.mxu0 0.0
  %135 = vmatpush1.msra.mxu0 0.0
  %136 = vmatprep.subr.mxu0 0.0
  %137 = vmatpush1.msra.mxu0 0.0
  %138 = vmatprep.subr.mxu0 0.0
  %139 = vmatpush1.msra.mxu0 0.0
  %140 = vmatprep.subr.mxu0 0.0
  %141 = vmatpush1.msra.mxu0 0.0
  %142 = vmatprep.subr.mxu0 0.0
  %143 = vmatpush1.msra.mxu0 0.0
  %144 = vmatprep.subr.mxu0 0.0
  %145 = vmatpush1.msra.mxu0 0.0
  %146 = vmatprep.subr.mxu0 0.0
  %147 = vmatpush1.msra.mxu0 0.0
  %148 = vmatprep.subr.mxu0 0.0
  %149 = vmatpush1.msra.mxu0 0.0
  %150 = vmatprep.subr.mxu0 0.0
  %151 = vmatpush1.msra.mxu0 0.0
  %152 = vmatprep.subr.mxu0 0.0
  %153 = vmatpush1.msra.mxu0 0.0
  %154 = vmatprep.subr.mxu0 0.0
  %155 = vmatpush1.msra.mxu0 0.0
  %156 = vmatprep.subr.mxu0 0.0
  %157 = vmatpush1.msra.mxu0 0.0
  %158 = vmatprep.subr.mxu0 0.0
  %159 = vmatpush1.msra.mxu0 0.0
  %160 = vmatprep.subr.mxu0 0.0
  %161 = vmatpush1.msra.mxu0 0.0
  %162 = vmatprep.subr.mxu0 0.0
  %163 = vmatpush1.msra.mxu0 0.0
  %164 = vmatprep.subr.mxu0 0.0
  %165 = vmatpush1.msra.mxu0 0.0
  %166 = vmatprep.subr.mxu0 0.0
  %167 = vmatpush1.msra.mxu0 0.0
  %168 = vmatprep.subr.mxu0 0.0
  %169 = vmatpush1.msra.mxu0 0.0
  %170 = vmatprep.subr.mxu0 0.0
  %171 = vmatpush1.msra.mxu0 0.0
  %172 = vmatprep.subr.mxu0 0.0
  %173 = vmatpush1.msra.mxu0 0.0
  %174 = vmatprep.mubr.f32.mxu0 0.0
  %175 = vmatmul.mubr.f32.gmra.mrb[0].mxu0 %v102
  %v176 = vpop.f32.mrb[0].mxu0
  %v177 = vadd.f32 0.0, %v176
  %v178 = vpop.f32.mrb[0].mxu0
  %179 = vmatprep.mubr.f32.mxu0 0.0
  %180 = vmatmul.mubr.f32.gmra.mrb[0].mxu0 %v105
  %v181 = vpop.f32.mrb[0].mxu0
  %v182 = vadd.f32 0.0, %v181
  %v183 = vpop.f32.mrb[0].mxu0
  %184 = vmatprep.mubr.f32.mxu0 0.0
  %185 = vmatmul.mubr.f32.gmra.mrb[0].mxu0 %v108
  %v186 = vpop.f32.mrb[0].mxu0
  %v187 = vadd.f32 0.0, %v186
  %v188 = vpop.f32.mrb[0].mxu0
  %189 = vdwg.mxu0
  %191 = vset.pattern.permute.xlu0 58
  %192 = vperm.xlu0 %191, %v49
  %v193 = vpop.permute.xlu0 %192
  %196 = vset.pattern.permute.xlu0 58
  %197 = vperm.xlu0 %196, %v50
  %v198 = vpop.permute.xlu0 %197
  %201 = vset.pattern.permute.xlu0 58
  %202 = vperm.xlu0 %201, %v51
  %v203 = vpop.permute.xlu0 %202
  %v205 = vmul.f32 %v177, %v193
  %v206 = vmul.f32 %v182, %v198
  %v207 = vmul.f32 %v187, %v203
  %vm208 = vcmask 261120
  %v209 = vsel %vm208, %v205, 0.0
  %210 = vadd.xlane.f32.xlu0 %v209
  %v211 = vpop.xlane.xlu0 %210
  %v212 = vsel %vm208, %v206, 0.0
  %213 = vadd.xlane.f32.xlu0 %v212
  %v214 = vpop.xlane.xlu0 %213
  %v215 = vsel %vm208, %v207, 0.0
  %216 = vadd.xlane.f32.xlu0 %v215
  %v217 = vpop.xlane.xlu0 %216
  %v218 = vrcp.pop 32.0
  %v219 = vmul.f32 %v211, %v218
  %v220 = vmul.f32 %v214, %v218
  %v221 = vmul.f32 %v217, %v218
  %v222 = vsub.f32 %v205, %v219
  %v223 = vsub.f32 %v206, %v220
  %v224 = vsub.f32 %v207, %v221
  %v225 = vmul.f32 %v222, %v222
  %v226 = vmul.f32 %v223, %v223
  %v227 = vmul.f32 %v224, %v224
  %v228 = vsel %vm208, %v225, 0.0
  %229 = vadd.xlane.f32.xlu0 %v228
  %v230 = vpop.xlane.xlu0 %229
  %v231 = vsel %vm208, %v226, 0.0
  %232 = vadd.xlane.f32.xlu0 %v231
  %v233 = vpop.xlane.xlu0 %232
  %v234 = vsel %vm208, %v227, 0.0
  %235 = vadd.xlane.f32.xlu0 %v234
  %v236 = vpop.xlane.xlu0 %235
  %v237 = vmul.f32 %v230, %v218
  %v238 = vmul.f32 %v233, %v218
  %v239 = vmul.f32 %v236, %v218
  %v240 = vadd.f32 %v237, 1e-05
  %v241 = vadd.f32 %v238, 1e-05
  %v242 = vadd.f32 %v239, 1e-05
  %v243 = vrsqrt.pop %v240
  %v244 = vrsqrt.pop %v241
  %v245 = vrsqrt.pop %v242
  %v246 = vmul.f32 %v222, %v243
  %v247 = vmul.f32 %v223, %v244
  %v248 = vmul.f32 %v224, %v245
  %v249 = vlaneseq
  %v250 = vshrl.u32 %v249, 7
  %v251 = vsub.s32 0, %v250
  %v252 = vrot.slane %v48, %v251
  %v253 = vmul.f32 %v246, %v252
  %v254 = vmul.f32 %v247, %v252
  %v255 = vmul.f32 %v248, %v252
  %v256 = vlaneseq
  %v257 = vshrl.u32 %v256, 7
  %v258 = vsub.s32 1, %v257
  %v259 = vrot.slane %v48, %v258
  %v260 = vadd.f32 %v253, %v259
  %v261 = vadd.f32 %v254, %v259
  %v262 = vadd.f32 %v255, %v259
  %v264 = vsel %vm208, %v260, 0
  %v267 = vsel %vm208, %v261, 0
  %v270 = vsel %vm208, %v262, 0
  %272 = vmatprep.subr.mxu0 0.0
  %273 = vmatpush1.msra.mxu0 %v36
  %274 = vmatprep.subr.mxu0 0.0
  %275 = vmatpush1.msra.mxu0 %v37
  %276 = vmatprep.subr.mxu0 0.0
  %277 = vmatpush1.msra.mxu0 %v38
  %278 = vmatprep.subr.mxu0 0.0
  %279 = vmatpush1.msra.mxu0 %v39
  %280 = vmatprep.subr.mxu0 0.0
  %281 = vmatpush1.msra.mxu0 0.0
  %282 = vmatprep.subr.mxu0 0.0
  %283 = vmatpush1.msra.mxu0 0.0
  %284 = vmatprep.subr.mxu0 0.0
  %285 = vmatpush1.msra.mxu0 0.0
  %286 = vmatprep.subr.mxu0 0.0
  %287 = vmatpush1.msra.mxu0 0.0
  %288 = vmatprep.subr.mxu0 0.0
  %289 = vmatpush1.msra.mxu0 0.0
  %290 = vmatprep.subr.mxu0 0.0
  %291 = vmatpush1.msra.mxu0 0.0
  %292 = vmatprep.subr.mxu0 0.0
  %293 = vmatpush1.msra.mxu0 0.0
  %294 = vmatprep.subr.mxu0 0.0
  %295 = vmatpush1.msra.mxu0 0.0
  %296 = vmatprep.subr.mxu0 0.0
  %297 = vmatpush1.msra.mxu0 0.0
  %298 = vmatprep.subr.mxu0 0.0
  %299 = vmatpush1.msra.mxu0 0.0
  %300 = vmatprep.subr.mxu0 0.0
  %301 = vmatpush1.msra.mxu0 0.0
  %302 = vmatprep.subr.mxu0 0.0
  %303 = vmatpush1.msra.mxu0 0.0
  %304 = vmatprep.subr.mxu0 0.0
  %305 = vmatpush1.msra.mxu0 0.0
  %306 = vmatprep.subr.mxu0 0.0
  %307 = vmatpush1.msra.mxu0 0.0
  %308 = vmatprep.subr.mxu0 0.0
  %309 = vmatpush1.msra.mxu0 0.0
  %310 = vmatprep.subr.mxu0 0.0
  %311 = vmatpush1.msra.mxu0 0.0
  %312 = vmatprep.subr.mxu0 0.0
  %313 = vmatpush1.msra.mxu0 0.0
  %314 = vmatprep.subr.mxu0 0.0
  %315 = vmatpush1.msra.mxu0 0.0
  %316 = vmatprep.subr.mxu0 0.0
  %317 = vmatpush1.msra.mxu0 0.0
  %318 = vmatprep.subr.mxu0 0.0
  %319 = vmatpush1.msra.mxu0 0.0
  %320 = vmatprep.subr.mxu0 0.0
  %321 = vmatpush1.msra.mxu0 0.0
  %322 = vmatprep.subr.mxu0 0.0
  %323 = vmatpush1.msra.mxu0 0.0
  %324 = vmatprep.subr.mxu0 0.0
  %325 = vmatpush1.msra.mxu0 0.0
  %326 = vmatprep.subr.mxu0 0.0
  %327 = vmatpush1.msra.mxu0 0.0
  %328 = vmatprep.subr.mxu0 0.0
  %329 = vmatpush1.msra.mxu0 0.0
  %330 = vmatprep.subr.mxu0 0.0
  %331 = vmatpush1.msra.mxu0 0.0
  %332 = vmatprep.subr.mxu0 0.0
  %333 = vmatpush1.msra.mxu0 0.0
  %334 = vmatprep.subr.mxu0 0.0
  %335 = vmatpush1.msra.mxu0 0.0
  %336 = vmatprep.mubr.f32.mxu0 0.0
  %337 = vmatmul.mubr.f32.gmra.mrb[0].mxu0 %v264
  %v338 = vpop.f32.mrb[0].mxu0
  %v339 = vadd.f32 0.0, %v338
  %v340 = vpop.f32.mrb[0].mxu0
  %341 = vmatprep.mubr.f32.mxu0 0.0
  %342 = vmatmul.mubr.f32.gmra.mrb[0].mxu0 %v267
  %v343 = vpop.f32.mrb[0].mxu0
  %v344 = vadd.f32 0.0, %v343
  %v345 = vpop.f32.mrb[0].mxu0
  %346 = vmatprep.mubr.f32.mxu0 0.0
  %347 = vmatmul.mubr.f32.gmra.mrb[0].mxu0 %v270
  %v348 = vpop.f32.mrb[0].mxu0
  %v349 = vadd.f32 0.0, %v348
  %v350 = vpop.f32.mrb[0].mxu0
  %351 = vdwg.mxu0
  %355 = vrot.lane.b32.xlu0 %v339, 96
  %v356 = vpop.permute.xlu0 %355
  %357 = vrot.lane.b32.xlu0 %v344, 96
  %v358 = vpop.permute.xlu0 %357
  %359 = vrot.lane.b32.xlu0 %v349, 96
  %v360 = vpop.permute.xlu0 %359
  %v361 = vsel %vm208, %v339, 0
  %v363 = vsel %vm208, %v344, 0
  %v365 = vsel %vm208, %v349, 0
  %v367 = vsel %vm208, %v356, 0
  %v369 = vsel %vm208, %v358, 0
  %v371 = vsel %vm208, %v360, 0
  %373 = vmatprep.subr.mxu0 0.0
  %374 = vmatpush1.xpose.msra.mxu0 %v367
  %375 = vmatprep.subr.mxu0 0.0
  %376 = vmatpush1.xpose.msra.mxu0 %v369
  %377 = vmatprep.subr.mxu0 0.0
  %378 = vmatpush1.xpose.msra.mxu0 %v371
  %379 = vmatprep.subr.mxu0 0.0
  %380 = vmatpush1.xpose.msra.mxu0 0.0
  %381 = vmatprep.subr.mxu0 0.0
  %382 = vmatpush1.xpose.msra.mxu0 0.0
  %383 = vmatprep.subr.mxu0 0.0
  %384 = vmatpush1.xpose.msra.mxu0 0.0
  %385 = vmatprep.subr.mxu0 0.0
  %386 = vmatpush1.xpose.msra.mxu0 0.0
  %387 = vmatprep.subr.mxu0 0.0
  %388 = vmatpush1.xpose.msra.mxu0 0.0
  %389 = vmatprep.subr.mxu0 0.0
  %390 = vmatpush1.xpose.msra.mxu0 0.0
  %391 = vmatprep.subr.mxu0 0.0
  %392 = vmatpush1.xpose.msra.mxu0 0.0
  %393 = vmatprep.subr.mxu0 0.0
  %394 = vmatpush1.xpose.msra.mxu0 0.0
  %395 = vmatprep.subr.mxu0 0.0
  %396 = vmatpush1.xpose.msra.mxu0 0.0
  %397 = vmatprep.subr.mxu0 0.0
  %398 = vmatpush1.xpose.msra.mxu0 0.0
  %399 = vmatprep.subr.mxu0 0.0
  %400 = vmatpush1.xpose.msra.mxu0 0.0
  %401 = vmatprep.subr.mxu0 0.0
  %402 = vmatpush1.xpose.msra.mxu0 0.0
  %403 = vmatprep.subr.mxu0 0.0
  %404 = vmatpush1.xpose.msra.mxu0 0.0
  %405 = vmatprep.subr.mxu0 0.0
  %406 = vmatpush1.xpose.msra.mxu0 0.0
  %407 = vmatprep.subr.mxu0 0.0
  %408 = vmatpush1.xpose.msra.mxu0 0.0
  %409 = vmatprep.subr.mxu0 0.0
  %410 = vmatpush1.xpose.msra.mxu0 0.0
  %411 = vmatprep.subr.mxu0 0.0
  %412 = vmatpush1.xpose.msra.mxu0 0.0
  %413 = vmatprep.subr.mxu0 0.0
  %414 = vmatpush1.xpose.msra.mxu0 0.0
  %415 = vmatprep.subr.mxu0 0.0
  %416 = vmatpush1.xpose.msra.mxu0 0.0
  %417 = vmatprep.subr.mxu0 0.0
  %418 = vmatpush1.xpose.msra.mxu0 0.0
  %419 = vmatprep.subr.mxu0 0.0
  %420 = vmatpush1.xpose.msra.mxu0 0.0
  %421 = vmatprep.subr.mxu0 0.0
  %422 = vmatpush1.xpose.msra.mxu0 0.0
  %423 = vmatprep.subr.mxu0 0.0
  %424 = vmatpush1.xpose.msra.mxu0 0.0
  %425 = vmatprep.subr.mxu0 0.0
  %426 = vmatpush1.xpose.msra.mxu0 0.0
  %427 = vmatprep.subr.mxu0 0.0
  %428 = vmatpush1.xpose.msra.mxu0 0.0
  %429 = vmatprep.subr.mxu0 0.0
  %430 = vmatpush1.xpose.msra.mxu0 0.0
  %431 = vmatprep.subr.mxu0 0.0
  %432 = vmatpush1.xpose.msra.mxu0 0.0
  %433 = vmatprep.subr.mxu0 0.0
  %434 = vmatpush1.xpose.msra.mxu0 0.0
  %435 = vmatprep.subr.mxu0 0.0
  %436 = vmatpush1.xpose.msra.mxu0 0.0
  %437 = vmatprep.mubr.f32.mxu0 0.0
  %438 = vmatmul.mubr.f32.gmra.mrb[0].mxu0 %v361
  %v439 = vpop.f32.mrb[0].mxu0
  %v440 = vadd.f32 0.0, %v439
  %v441 = vpop.f32.mrb[0].mxu0
  %442 = vmatprep.mubr.f32.mxu0 0.0
  %443 = vmatmul.mubr.f32.gmra.mrb[0].mxu0 %v363
  %v444 = vpop.f32.mrb[0].mxu0
  %v445 = vadd.f32 0.0, %v444
  %v446 = vpop.f32.mrb[0].mxu0
  %447 = vmatprep.mubr.f32.mxu0 0.0
  %448 = vmatmul.mubr.f32.gmra.mrb[0].mxu0 %v365
  %v449 = vpop.f32.mrb[0].mxu0
  %v450 = vadd.f32 0.0, %v449
  %v451 = vpop.f32.mrb[0].mxu0
  %452 = vdwg.mxu0
  %v453 = vmul.f32 %v440, 0.17677669
  %v454 = vmul.f32 %v445, 0.17677669
  %v455 = vmul.f32 %v450, 0.17677669
  %v456 = vlaneseq
  %v457 = vshrl.u32 %v456, 7
  %v458 = vadd.s32 %v457, 8
  %v459 = vadd.s32 %v457, 16
  %vm460 = vcmp.ge.s32.totalorder %v457, 0
  %vm461 = vcmp.ge.s32.totalorder %v458, 0
  %vm462 = vcmp.ge.s32.totalorder %v459, 0
  %vm463 = vcmp.lt.s32.totalorder %v457, 8
  %vm464 = vcmp.lt.s32.totalorder %v458, 8
  %vm465 = vcmp.lt.s32.totalorder %v459, 8
  %vm466 = vmand %vm460, %vm463
  %vm467 = vmand %vm461, %vm464
  %vm468 = vmand %vm462, %vm465
  %vm469 = vcmp.ge.s32.totalorder %v457, 16
  %vm470 = vcmp.ge.s32.totalorder %v458, 16
  %vm471 = vcmp.ge.s32.totalorder %v459, 16
  %vm472 = vcmp.lt.s32.totalorder %v457, 20
  %vm473 = vcmp.lt.s32.totalorder %v458, 20
  %vm474 = vcmp.lt.s32.totalorder %v459, 20
  %vm475 = vmand %vm469, %vm472
  %vm476 = vmand %vm470, %vm473
  %vm477 = vmand %vm471, %vm474
  %vm478 = vmor %vm466, %vm475
  %vm479 = vmor %vm467, %vm476
  %vm480 = vmor %vm468, %vm477
  %vm481 = vcmp.ge.s32.totalorder %v56, 0
  %vm482 = vcmp.lt.s32.totalorder %v56, 8
  %vm483 = vmand %vm481, %vm482
  %vm484 = vcmp.ge.s32.totalorder %v56, 16
  %vm485 = vcmp.lt.s32.totalorder %v56, 20
  %vm486 = vmand %vm484, %vm485
  %vm487 = vmor %vm483, %vm486
  %vm488 = vmand %vm478, %vm487
  %vm489 = vmand %vm479, %vm487
  %vm490 = vmand %vm480, %vm487
  %vm491 = vcmp.ge.s32.totalorder %v457, 8
  %vm492 = vcmp.ge.s32.totalorder %v458, 8
  %vm493 = vcmp.ge.s32.totalorder %v459, 8
  %vm494 = vcmp.lt.s32.totalorder %v457, 16
  %vm495 = vcmp.lt.s32.totalorder %v458, 16
  %vm496 = vcmp.lt.s32.totalorder %v459, 16
  %vm497 = vmand %vm491, %vm494
  %vm498 = vmand %vm492, %vm495
  %vm499 = vmand %vm493, %vm496
  %vm500 = vcmp.ge.s32.totalorder %v457, 20
  %vm501 = vcmp.ge.s32.totalorder %v458, 20
  %vm502 = vcmp.ge.s32.totalorder %v459, 20
  %vm503 = vcmp.lt.s32.totalorder %v457, 24
  %vm504 = vcmp.lt.s32.totalorder %v458, 24
  %vm505 = vcmp.lt.s32.totalorder %v459, 24
  %vm506 = vmand %vm500, %vm503
  %vm507 = vmand %vm501, %vm504
  %vm508 = vmand %vm502, %vm505
  %vm509 = vmor %vm497, %vm506
  %vm510 = vmor %vm498, %vm507
  %vm511 = vmor %vm499, %vm508
  %vm512 = vcmp.ge.s32.totalorder %v56, 8
  %vm513 = vcmp.lt.s32.totalorder %v56, 16
  %vm514 = vmand %vm512, %vm513
  %vm515 = vcmp.ge.s32.totalorder %v56, 20
  %vm516 = vcmp.lt.s32.totalorder %v56, 24
  %vm517 = vmand %vm515, %vm516
  %vm518 = vmor %vm514, %vm517
  %vm519 = vmand %vm509, %vm518
  %vm520 = vmand %vm510, %vm518
  %vm521 = vmand %vm511, %vm518
  %vm522 = vmor %vm488, %vm519
  %vm523 = vmor %vm489, %vm520
  %vm524 = vmor %vm490, %vm521
  %v525 = vsel %vm522, %v453, -1e+30
  %v526 = vsel %vm523, %v454, -1e+30
  %v527 = vsel %vm524, %v455, -1e+30
  %vm528 = vcmask 195584
  %v529 = vsel %vm528, %v525, -inf
  %530 = vmax.xlane.f32.xlu0 %v529
  %v531 = vpop.xlane.xlu0 %530
  %v532 = vsel %vm528, %v526, -inf
  %533 = vmax.xlane.f32.xlu0 %v532
  %v534 = vpop.xlane.xlu0 %533
  %v535 = vsel %vm528, %v527, -inf
  %536 = vmax.xlane.f32.xlu0 %v535
  %v537 = vpop.xlane.xlu0 %536
  %v538 = vsub.f32 %v525, %v531
  %v539 = vsub.f32 %v526, %v534
  %v540 = vsub.f32 %v527, %v537
  %v541 = vmul.f32 %v538, 1.442695
  %v542 = vpow.pop %v541
  %v543 = vmul.f32 %v539, 1.442695
  %v544 = vpow.pop %v543
  %v545 = vmul.f32 %v540, 1.442695
  %v546 = vpow.pop %v545
  %v547 = vsel %vm528, %v542, 0.0
  %548 = vadd.xlane.f32.xlu0 %v547
  %v549 = vpop.xlane.xlu0 %548
  %v550 = vsel %vm528, %v544, 0.0
  %551 = vadd.xlane.f32.xlu0 %v550
  %v552 = vpop.xlane.xlu0 %551
  %v553 = vsel %vm528, %v546, 0.0
  %554 = vadd.xlane.f32.xlu0 %v553
  %v555 = vpop.xlane.xlu0 %554
  %v556 = vrcp.pop %v549
  %v557 = vrcp.pop %v552
  %v558 = vrcp.pop %v555
  %v559 = vmul.f32 %v542, %v556
  %v560 = vmul.f32 %v544, %v557
  %v561 = vmul.f32 %v546, %v558
  %562 = vrot.lane.b32.xlu0 %v339, 64
  %v563 = vpop.permute.xlu0 %562
  %564 = vrot.lane.b32.xlu0 %v344, 64
  %v565 = vpop.permute.xlu0 %564
  %566 = vrot.lane.b32.xlu0 %v349, 64
  %v567 = vpop.permute.xlu0 %566
  %v572 = vsel %vm528, %v559, 0
  %v575 = vsel %vm528, %v560, 0
  %v578 = vsel %vm528, %v561, 0
  %580 = vmatprep.subr.mxu0 0.0
  %581 = vmatpush1.msra.mxu0 %v563
  %582 = vmatprep.subr.mxu0 0.0
  %583 = vmatpush1.msra.mxu0 %v565
  %584 = vmatprep.subr.mxu0 0.0
  %585 = vmatpush1.msra.mxu0 %v567
  %586 = vmatprep.subr.mxu0 0.0
  %587 = vmatpush1.msra.mxu0 0.0
  %588 = vmatprep.subr.mxu0 0.0
  %589 = vmatpush1.msra.mxu0 0.0
  %590 = vmatprep.subr.mxu0 0.0
  %591 = vmatpush1.msra.mxu0 0.0
  %592 = vmatprep.subr.mxu0 0.0
  %593 = vmatpush1.msra.mxu0 0.0
  %594 = vmatprep.subr.mxu0 0.0
  %595 = vmatpush1.msra.mxu0 0.0
  %596 = vmatprep.subr.mxu0 0.0
  %597 = vmatpush1.msra.mxu0 0.0
  %598 = vmatprep.subr.mxu0 0.0
  %599 = vmatpush1.msra.mxu0 0.0
  %600 = vmatprep.subr.mxu0 0.0
  %601 = vmatpush1.msra.mxu0 0.0
  %602 = vmatprep.subr.mxu0 0.0
  %603 = vmatpush1.msra.mxu0 0.0
  %604 = vmatprep.subr.mxu0 0.0
  %605 = vmatpush1.msra.mxu0 0.0
  %606 = vmatprep.subr.mxu0 0.0
  %607 = vmatpush1.msra.mxu0 0.0
  %608 = vmatprep.subr.mxu0 0.0
  %609 = vmatpush1.msra.mxu0 0.0
  %610 = vmatprep.subr.mxu0 0.0
  %611 = vmatpush1.msra.mxu0 0.0
  %612 = vmatprep.subr.mxu0 0.0
  %613 = vmatpush1.msra.mxu0 0.0
  %614 = vmatprep.subr.mxu0 0.0
  %615 = vmatpush1.msra.mxu0 0.0
  %616 = vmatprep.subr.mxu0 0.0
  %617 = vmatpush1.msra.mxu0 0.0
  %618 = vmatprep.subr.mxu0 0.0
  %619 = vmatpush1.msra.mxu0 0.0
  %620 = vmatprep.subr.mxu0 0.0
  %621 = vmatpush1.msra.mxu0 0.0
  %622 = vmatprep.subr.mxu0 0.0
  %623 = vmatpush1.msra.mxu0 0.0
  %624 = vmatprep.subr.mxu0 0.0
  %625 = vmatpush1.msra.mxu0 0.0
  %626 = vmatprep.subr.mxu0 0.0
  %627 = vmatpush1.msra.mxu0 0.0
  %628 = vmatprep.subr.mxu0 0.0
  %629 = vmatpush1.msra.mxu0 0.0
  %630 = vmatprep.subr.mxu0 0.0
  %631 = vmatpush1.msra.mxu0 0.0
  %632 = vmatprep.subr.mxu0 0.0
  %633 = vmatpush1.msra.mxu0 0.0
  %634 = vmatprep.subr.mxu0 0.0
  %635 = vmatpush1.msra.mxu0 0.0
  %636 = vmatprep.subr.mxu0 0.0
  %637 = vmatpush1.msra.mxu0 0.0
  %638 = vmatprep.subr.mxu0 0.0
  %639 = vmatpush1.msra.mxu0 0.0
  %640 = vmatprep.subr.mxu0 0.0
  %641 = vmatpush1.msra.mxu0 0.0
  %642 = vmatprep.subr.mxu0 0.0
  %643 = vmatpush1.msra.mxu0 0.0
  %644 = vmatprep.mubr.f32.mxu0 0.0
  %645 = vmatmul.mubr.f32.gmra.mrb[0].mxu0 %v572
  %v646 = vpop.f32.mrb[0].mxu0
  %v647 = vadd.f32 0.0, %v646
  %v648 = vpop.f32.mrb[0].mxu0
  %649 = vmatprep.mubr.f32.mxu0 0.0
  %650 = vmatmul.mubr.f32.gmra.mrb[0].mxu0 %v575
  %v651 = vpop.f32.mrb[0].mxu0
  %v652 = vadd.f32 0.0, %v651
  %v653 = vpop.f32.mrb[0].mxu0
  %654 = vmatprep.mubr.f32.mxu0 0.0
  %655 = vmatmul.mubr.f32.gmra.mrb[0].mxu0 %v578
  %v656 = vpop.f32.mrb[0].mxu0
  %v657 = vadd.f32 0.0, %v656
  %v658 = vpop.f32.mrb[0].mxu0
  %659 = vdwg.mxu0
  %v661 = vsel %vm208, %v647, 0
  %v664 = vsel %vm208, %v652, 0
  %v667 = vsel %vm208, %v657, 0
  %669 = vmatprep.subr.mxu0 0.0
  %670 = vmatpush1.msra.mxu0 %v24
  %671 = vmatprep.subr.mxu0 0.0
  %672 = vmatpush1.msra.mxu0 %v25
  %673 = vmatprep.subr.mxu0 0.0
  %674 = vmatpush1.msra.mxu0 %v26
  %675 = vmatprep.subr.mxu0 0.0
  %676 = vmatpush1.msra.mxu0 %v27
  %677 = vmatprep.subr.mxu0 0.0
  %678 = vmatpush1.msra.mxu0 0.0
  %679 = vmatprep.subr.mxu0 0.0
  %680 = vmatpush1.msra.mxu0 0.0
  %681 = vmatprep.subr.mxu0 0.0
  %682 = vmatpush1.msra.mxu0 0.0
  %683 = vmatprep.subr.mxu0 0.0
  %684 = vmatpush1.msra.mxu0 0.0
  %685 = vmatprep.subr.mxu0 0.0
  %686 = vmatpush1.msra.mxu0 0.0
  %687 = vmatprep.subr.mxu0 0.0
  %688 = vmatpush1.msra.mxu0 0.0
  %689 = vmatprep.subr.mxu0 0.0
  %690 = vmatpush1.msra.mxu0 0.0
  %691 = vmatprep.subr.mxu0 0.0
  %692 = vmatpush1.msra.mxu0 0.0
  %693 = vmatprep.subr.mxu0 0.0
  %694 = vmatpush1.msra.mxu0 0.0
  %695 = vmatprep.subr.mxu0 0.0
  %696 = vmatpush1.msra.mxu0 0.0
  %697 = vmatprep.subr.mxu0 0.0
  %698 = vmatpush1.msra.mxu0 0.0
  %699 = vmatprep.subr.mxu0 0.0
  %700 = vmatpush1.msra.mxu0 0.0
  %701 = vmatprep.subr.mxu0 0.0
  %702 = vmatpush1.msra.mxu0 0.0
  %703 = vmatprep.subr.mxu0 0.0
  %704 = vmatpush1.msra.mxu0 0.0
  %705 = vmatprep.subr.mxu0 0.0
  %706 = vmatpush1.msra.mxu0 0.0
  %707 = vmatprep.subr.mxu0 0.0
  %708 = vmatpush1.msra.mxu0 0.0
  %709 = vmatprep.subr.mxu0 0.0
  %710 = vmatpush1.msra.mxu0 0.0
  %711 = vmatprep.subr.mxu0 0.0
  %712 = vmatpush1.msra.mxu0 0.0
  %713 = vmatprep.subr.mxu0 0.0
  %714 = vmatpush1.msra.mxu0 0.0
  %715 = vmatprep.subr.mxu0 0.0
  %716 = vmatpush1.msra.mxu0 0.0
  %717 = vmatprep.subr.mxu0 0.0
  %718 = vmatpush1.msra.mxu0 0.0
  %719 = vmatprep.subr.mxu0 0.0
  %720 = vmatpush1.msra.mxu0 0.0
  %721 = vmatprep.subr.mxu0 0.0
  %722 = vmatpush1.msra.mxu0 0.0
  %723 = vmatprep.subr.mxu0 0.0
  %724 = vmatpush1.msra.mxu0 0.0
  %725 = vmatprep.subr.mxu0 0.0
  %726 = vmatpush1.msra.mxu0 0.0
  %727 = vmatprep.subr.mxu0 0.0
  %728 = vmatpush1.msra.mxu0 0.0
  %729 = vmatprep.subr.mxu0 0.0
  %730 = vmatpush1.msra.mxu0 0.0
  %731 = vmatprep.subr.mxu0 0.0
  %732 = vmatpush1.msra.mxu0 0.0
  %733 = vmatprep.mubr.f32.mxu0 0.0
  %734 = vmatmul.mubr.f32.gmra.mrb[0].mxu0 %v661
  %v735 = vpop.f32.mrb[0].mxu0
  %v736 = vadd.f32 0.0, %v735
  %v737 = vpop.f32.mrb[0].mxu0
  %738 = vmatprep.mubr.f32.mxu0 0.0
  %739 = vmatmul.mubr.f32.gmra.mrb[0].mxu0 %v664
  %v740 = vpop.f32.mrb[0].mxu0
  %v741 = vadd.f32 0.0, %v740
  %v742 = vpop.f32.mrb[0].mxu0
  %743 = vmatprep.mubr.f32.mxu0 0.0
  %744 = vmatmul.mubr.f32.gmra.mrb[0].mxu0 %v667
  %v745 = vpop.f32.mrb[0].mxu0
  %v746 = vadd.f32 0.0, %v745
  %v747 = vpop.f32.mrb[0].mxu0
  %748 = vdwg.mxu0
  %v749 = vadd.f32 %v205, %v736
  %v750 = vadd.f32 %v206, %v741
  %v751 = vadd.f32 %v207, %v746
  %v752 = vsel %vm208, %v749, 0.0
  %753 = vadd.xlane.f32.xlu0 %v752
  %v754 = vpop.xlane.xlu0 %753
  %v755 = vsel %vm208, %v750, 0.0
  %756 = vadd.xlane.f32.xlu0 %v755
  %v757 = vpop.xlane.xlu0 %756
  %v758 = vsel %vm208, %v751, 0.0
  %759 = vadd.xlane.f32.xlu0 %v758
  %v760 = vpop.xlane.xlu0 %759
  %v761 = vmul.f32 %v754, %v218
  %v762 = vmul.f32 %v757, %v218
  %v763 = vmul.f32 %v760, %v218
  %v764 = vsub.f32 %v749, %v761
  %v765 = vsub.f32 %v750, %v762
  %v766 = vsub.f32 %v751, %v763
  %v767 = vmul.f32 %v764, %v764
  %v768 = vmul.f32 %v765, %v765
  %v769 = vmul.f32 %v766, %v766
  %v770 = vsel %vm208, %v767, 0.0
  %771 = vadd.xlane.f32.xlu0 %v770
  %v772 = vpop.xlane.xlu0 %771
  %v773 = vsel %vm208, %v768, 0.0
  %774 = vadd.xlane.f32.xlu0 %v773
  %v775 = vpop.xlane.xlu0 %774
  %v776 = vsel %vm208, %v769, 0.0
  %777 = vadd.xlane.f32.xlu0 %v776
  %v778 = vpop.xlane.xlu0 %777
  %v779 = vmul.f32 %v772, %v218
  %v780 = vmul.f32 %v775, %v218
  %v781 = vmul.f32 %v778, %v218
  %v782 = vadd.f32 %v779, 1e-05
  %v783 = vadd.f32 %v780, 1e-05
  %v784 = vadd.f32 %v781, 1e-05
  %v785 = vrsqrt.pop %v782
  %v786 = vrsqrt.pop %v783
  %v787 = vrsqrt.pop %v784
  %v788 = vmul.f32 %v764, %v785
  %v789 = vmul.f32 %v765, %v786
  %v790 = vmul.f32 %v766, %v787
  %v791 = vlaneseq
  %v792 = vshrl.u32 %v791, 7
  %v793 = vsub.s32 2, %v792
  %v794 = vrot.slane %v48, %v793
  %v795 = vmul.f32 %v788, %v794
  %v796 = vmul.f32 %v789, %v794
  %v797 = vmul.f32 %v790, %v794
  %v798 = vlaneseq
  %v799 = vshrl.u32 %v798, 7
  %v800 = vsub.s32 3, %v799
  %v801 = vrot.slane %v48, %v800
  %v802 = vadd.f32 %v795, %v801
  %v803 = vadd.f32 %v796, %v801
  %v804 = vadd.f32 %v797, %v801
  %v805 = vlaneseq
  %v806 = vshrl.u32 %v805, 7
  %v807 = vsub.s32 4, %v806
  %v808 = vrot.slane %v48, %v807
  %v810 = vsel %vm208, %v802, 0
  %v813 = vsel %vm208, %v803, 0
  %v816 = vsel %vm208, %v804, 0
  %818 = vmatprep.subr.mxu0 0.0
  %819 = vmatpush1.msra.mxu0 %v40
  %820 = vmatprep.subr.mxu0 0.0
  %821 = vmatpush1.msra.mxu0 %v41
  %822 = vmatprep.subr.mxu0 0.0
  %823 = vmatpush1.msra.mxu0 %v42
  %824 = vmatprep.subr.mxu0 0.0
  %825 = vmatpush1.msra.mxu0 %v43
  %826 = vmatprep.subr.mxu0 0.0
  %827 = vmatpush1.msra.mxu0 0.0
  %828 = vmatprep.subr.mxu0 0.0
  %829 = vmatpush1.msra.mxu0 0.0
  %830 = vmatprep.subr.mxu0 0.0
  %831 = vmatpush1.msra.mxu0 0.0
  %832 = vmatprep.subr.mxu0 0.0
  %833 = vmatpush1.msra.mxu0 0.0
  %834 = vmatprep.subr.mxu0 0.0
  %835 = vmatpush1.msra.mxu0 0.0
  %836 = vmatprep.subr.mxu0 0.0
  %837 = vmatpush1.msra.mxu0 0.0
  %838 = vmatprep.subr.mxu0 0.0
  %839 = vmatpush1.msra.mxu0 0.0
  %840 = vmatprep.subr.mxu0 0.0
  %841 = vmatpush1.msra.mxu0 0.0
  %842 = vmatprep.subr.mxu0 0.0
  %843 = vmatpush1.msra.mxu0 0.0
  %844 = vmatprep.subr.mxu0 0.0
  %845 = vmatpush1.msra.mxu0 0.0
  %846 = vmatprep.subr.mxu0 0.0
  %847 = vmatpush1.msra.mxu0 0.0
  %848 = vmatprep.subr.mxu0 0.0
  %849 = vmatpush1.msra.mxu0 0.0
  %850 = vmatprep.subr.mxu0 0.0
  %851 = vmatpush1.msra.mxu0 0.0
  %852 = vmatprep.subr.mxu0 0.0
  %853 = vmatpush1.msra.mxu0 0.0
  %854 = vmatprep.subr.mxu0 0.0
  %855 = vmatpush1.msra.mxu0 0.0
  %856 = vmatprep.subr.mxu0 0.0
  %857 = vmatpush1.msra.mxu0 0.0
  %858 = vmatprep.subr.mxu0 0.0
  %859 = vmatpush1.msra.mxu0 0.0
  %860 = vmatprep.subr.mxu0 0.0
  %861 = vmatpush1.msra.mxu0 0.0
  %862 = vmatprep.subr.mxu0 0.0
  %863 = vmatpush1.msra.mxu0 0.0
  %864 = vmatprep.subr.mxu0 0.0
  %865 = vmatpush1.msra.mxu0 0.0
  %866 = vmatprep.subr.mxu0 0.0
  %867 = vmatpush1.msra.mxu0 0.0
  %868 = vmatprep.subr.mxu0 0.0
  %869 = vmatpush1.msra.mxu0 0.0
  %870 = vmatprep.subr.mxu0 0.0
  %871 = vmatpush1.msra.mxu0 0.0
  %872 = vmatprep.subr.mxu0 0.0
  %873 = vmatpush1.msra.mxu0 0.0
  %874 = vmatprep.subr.mxu0 0.0
  %875 = vmatpush1.msra.mxu0 0.0
  %876 = vmatprep.subr.mxu0 0.0
  %877 = vmatpush1.msra.mxu0 0.0
  %878 = vmatprep.subr.mxu0 0.0
  %879 = vmatpush1.msra.mxu0 0.0
  %880 = vmatprep.subr.mxu0 0.0
  %881 = vmatpush1.msra.mxu0 0.0
  %882 = vmatprep.mubr.f32.mxu0 0.0
  %883 = vmatmul.mubr.f32.gmra.mrb[0].mxu0 %v810
  %v884 = vpop.f32.mrb[0].mxu0
  %v885 = vadd.f32 %v808, %v884
  %v886 = vpop.f32.mrb[0].mxu0
  %887 = vmatprep.mubr.f32.mxu0 0.0
  %888 = vmatmul.mubr.f32.gmra.mrb[0].mxu0 %v813
  %v889 = vpop.f32.mrb[0].mxu0
  %v890 = vadd.f32 %v808, %v889
  %v891 = vpop.f32.mrb[0].mxu0
  %892 = vmatprep.mubr.f32.mxu0 0.0
  %893 = vmatmul.mubr.f32.gmra.mrb[0].mxu0 %v816
  %v894 = vpop.f32.mrb[0].mxu0
  %v895 = vadd.f32 %v808, %v894
  %v896 = vpop.f32.mrb[0].mxu0
  %897 = vdwg.mxu0
  %v898 = vmax.f32 %v885, 0.0
  %v899 = vmax.f32 %v890, 0.0
  %v900 = vmax.f32 %v895, 0.0
  %vm901 = vcmask 523264
  %v903 = vsel %vm901, %v898, 0
  %v906 = vsel %vm901, %v899, 0
  %v909 = vsel %vm901, %v900, 0
  %911 = vmatprep.subr.mxu0 0.0
  %912 = vmatpush1.msra.mxu0 %v28
  %913 = vmatprep.subr.mxu0 0.0
  %914 = vmatpush1.msra.mxu0 %v29
  %915 = vmatprep.subr.mxu0 0.0
  %916 = vmatpush1.msra.mxu0 %v30
  %917 = vmatprep.subr.mxu0 0.0
  %918 = vmatpush1.msra.mxu0 %v31
  %919 = vmatprep.subr.mxu0 0.0
  %920 = vmatpush1.msra.mxu0 %v32
  %921 = vmatprep.subr.mxu0 0.0
  %922 = vmatpush1.msra.mxu0 %v33
  %923 = vmatprep.subr.mxu0 0.0
  %924 = vmatpush1.msra.mxu0 %v34
  %925 = vmatprep.subr.mxu0 0.0
  %926 = vmatpush1.msra.mxu0 %v35
  %927 = vmatprep.subr.mxu0 0.0
  %928 = vmatpush1.msra.mxu0 0.0
  %929 = vmatprep.subr.mxu0 0.0
  %930 = vmatpush1.msra.mxu0 0.0
  %931 = vmatprep.subr.mxu0 0.0
  %932 = vmatpush1.msra.mxu0 0.0
  %933 = vmatprep.subr.mxu0 0.0
  %934 = vmatpush1.msra.mxu0 0.0
  %935 = vmatprep.subr.mxu0 0.0
  %936 = vmatpush1.msra.mxu0 0.0
  %937 = vmatprep.subr.mxu0 0.0
  %938 = vmatpush1.msra.mxu0 0.0
  %939 = vmatprep.subr.mxu0 0.0
  %940 = vmatpush1.msra.mxu0 0.0
  %941 = vmatprep.subr.mxu0 0.0
  %942 = vmatpush1.msra.mxu0 0.0
  %943 = vmatprep.subr.mxu0 0.0
  %944 = vmatpush1.msra.mxu0 0.0
  %945 = vmatprep.subr.mxu0 0.0
  %946 = vmatpush1.msra.mxu0 0.0
  %947 = vmatprep.subr.mxu0 0.0
  %948 = vmatpush1.msra.mxu0 0.0
  %949 = vmatprep.subr.mxu0 0.0
  %950 = vmatpush1.msra.mxu0 0.0
  %951 = vmatprep.subr.mxu0 0.0
  %952 = vmatpush1.msra.mxu0 0.0
  %953 = vmatprep.subr.mxu0 0.0
  %954 = vmatpush1.msra.mxu0 0.0
  %955 = vmatprep.subr.mxu0 0.0
  %956 = vmatpush1.msra.mxu0 0.0
  %957 = vmatprep.subr.mxu0 0.0
  %958 = vmatpush1.msra.mxu0 0.0
  %959 = vmatprep.subr.mxu0 0.0
  %960 = vmatpush1.msra.mxu0 0.0
  %961 = vmatprep.subr.mxu0 0.0
  %962 = vmatpush1.msra.mxu0 0.0
  %963 = vmatprep.subr.mxu0 0.0
  %964 = vmatpush1.msra.mxu0 0.0
  %965 = vmatprep.subr.mxu0 0.0
  %966 = vmatpush1.msra.mxu0 0.0
  %967 = vmatprep.subr.mxu0 0.0
  %968 = vmatpush1.msra.mxu0 0.0
  %969 = vmatprep.subr.mxu0 0.0
  %970 = vmatpush1.msra.mxu0 0.0
  %971 = vmatprep.subr.mxu0 0.0
  %972 = vmatpush1.msra.mxu0 0.0
  %973 = vmatprep.subr.mxu0 0.0
  %974 = vmatpush1.msra.mxu0 0.0
  %975 = vmatprep.mubr.f32.mxu0 0.0
  %976 = vmatmul.mubr.f32.gmra.mrb[0].mxu0 %v903
  %v977 = vpop.f32.mrb[0].mxu0
  %v978 = vpop.f32.mrb[0].mxu0
  %979 = vmatprep.mubr.f32.mxu0 0.0
  %980 = vmatmul.mubr.f32.gmra.mrb[0].mxu0 %v906
  %v981 = vpop.f32.mrb[0].mxu0
  %v982 = vpop.f32.mrb[0].mxu0
  %983 = vmatprep.mubr.f32.mxu0 0.0
  %984 = vmatmul.mubr.f32.gmra.mrb[0].mxu0 %v909
  %v985 = vpop.f32.mrb[0].mxu0
  %v986 = vadd.f32 0.0, %v985
  %v987 = vpop.f32.mrb[0].mxu0
  %988 = vdwg.mxu0
  %v989 = vadd.f32 %v751, %v986
  %v990 = vlaneseq
  %v991 = vshrl.u32 %v990, 7
  %v992 = vsub.s32 5, %v991
  %v993 = vrot.slane %v48, %v992
  %v994 = vadd.f32 %v989, %v993
  %v995 = vlaneseq
  %v996 = vshrl.u32 %v995, 7
  %v997 = vsub.s32 6, %v996
  %v998 = vrot.slane %v48, %v997
  %v1000 = vsel %vm208, %v994, 0
  %1002 = vmatprep.subr.mxu0 0.0
  %1003 = vmatpush1.msra.mxu0 %v44
  %1004 = vmatprep.subr.mxu0 0.0
  %1005 = vmatpush1.msra.mxu0 %v45
  %1006 = vmatprep.subr.mxu0 0.0
  %1007 = vmatpush1.msra.mxu0 %v46
  %1008 = vmatprep.subr.mxu0 0.0
  %1009 = vmatpush1.msra.mxu0 %v47
  %1010 = vmatprep.subr.mxu0 0.0
  %1011 = vmatpush1.msra.mxu0 0.0
  %1012 = vmatprep.subr.mxu0 0.0
  %1013 = vmatpush1.msra.mxu0 0.0
  %1014 = vmatprep.subr.mxu0 0.0
  %1015 = vmatpush1.msra.mxu0 0.0
  %1016 = vmatprep.subr.mxu0 0.0
  %1017 = vmatpush1.msra.mxu0 0.0
  %1018 = vmatprep.subr.mxu0 0.0
  %1019 = vmatpush1.msra.mxu0 0.0
  %1020 = vmatprep.subr.mxu0 0.0
  %1021 = vmatpush1.msra.mxu0 0.0
  %1022 = vmatprep.subr.mxu0 0.0
  %1023 = vmatpush1.msra.mxu0 0.0
  %1024 = vmatprep.subr.mxu0 0.0
  %1025 = vmatpush1.msra.mxu0 0.0
  %1026 = vmatprep.subr.mxu0 0.0
  %1027 = vmatpush1.msra.mxu0 0.0
  %1028 = vmatprep.subr.mxu0 0.0
  %1029 = vmatpush1.msra.mxu0 0.0
  %1030 = vmatprep.subr.mxu0 0.0
  %1031 = vmatpush1.msra.mxu0 0.0
  %1032 = vmatprep.subr.mxu0 0.0
  %1033 = vmatpush1.msra.mxu0 0.0
  %1034 = vmatprep.subr.mxu0 0.0
  %1035 = vmatpush1.msra.mxu0 0.0
  %1036 = vmatprep.subr.mxu0 0.0
  %1037 = vmatpush1.msra.mxu0 0.0
  %1038 = vmatprep.subr.mxu0 0.0
  %1039 = vmatpush1.msra.mxu0 0.0
  %1040 = vmatprep.subr.mxu0 0.0
  %1041 = vmatpush1.msra.mxu0 0.0
  %1042 = vmatprep.subr.mxu0 0.0
  %1043 = vmatpush1.msra.mxu0 0.0
  %1044 = vmatprep.subr.mxu0 0.0
  %1045 = vmatpush1.msra.mxu0 0.0
  %1046 = vmatprep.subr.mxu0 0.0
  %1047 = vmatpush1.msra.mxu0 0.0
  %1048 = vmatprep.subr.mxu0 0.0
  %1049 = vmatpush1.msra.mxu0 0.0
  %1050 = vmatprep.subr.mxu0 0.0
  %1051 = vmatpush1.msra.mxu0 0.0
  %1052 = vmatprep.subr.mxu0 0.0
  %1053 = vmatpush1.msra.mxu0 0.0
  %1054 = vmatprep.subr.mxu0 0.0
  %1055 = vmatpush1.msra.mxu0 0.0
  %1056 = vmatprep.subr.mxu0 0.0
  %1057 = vmatpush1.msra.mxu0 0.0
  %1058 = vmatprep.subr.mxu0 0.0
  %1059 = vmatpush1.msra.mxu0 0.0
  %1060 = vmatprep.subr.mxu0 0.0
  %1061 = vmatpush1.msra.mxu0 0.0
  %1062 = vmatprep.subr.mxu0 0.0
  %1063 = vmatpush1.msra.mxu0 0.0
  %1064 = vmatprep.subr.mxu0 0.0
  %1065 = vmatpush1.msra.mxu0 0.0
  %1066 = vmatprep.mubr.f32.mxu0 0.0
  %1067 = vmatmul.mubr.f32.gmra.mrb[0].mxu0 %v1000
  %v1068 = vpop.f32.mrb[0].mxu0
  %v1069 = vadd.f32 %v998, %v1068
  %v1070 = vpop.f32.mrb[0].mxu0
  %1071 = vdwg.mxu0
  %1072 = vst [vmem:[%s4] sm:$0xff] %v1069
  // Predicated region
  $region18: #{bigcity_forward.1} parent=0 // pred_check
    _
  $region19: #{bigcity_forward.1} parent=0 // pred_check_branch
    %1074 = sbr.rel (0) target = $region21
  $region20: #{bigcity_forward.1} parent=0 // pred_region
    _
  $region21: #{bigcity_forward.1} parent=0 // pred_fallthru
    _
  // Predicated region
  $region22: #{bigcity_forward.1} parent=0 // pred_check
    _
  $region23: #{bigcity_forward.1} parent=0 // pred_check_branch
    %1076 = sbr.rel (0) target = $region25
  $region24: #{bigcity_forward.1} parent=0 // pred_region
    _
  $region25: #{bigcity_forward.1} parent=0 // pred_fallthru
    _

</llo_original>
